<compile_context>
chip_gen: v7x
topology: tpu7x:2x2x1
jax: 0.10.0
libtpu: 0.0.40
codegen_flags: <defaults>
</compile_context>

<pallas_src>
import functools

import jax
import jax.numpy as jnp
from jax.experimental import pallas as pl
from jax.experimental.pallas import tpu as pltpu

_LANE = 128
_SUBLANE = 8


def _round_up(x, m):
    return ((x + m - 1) // m) * m


def _pad2d(x, rows, cols):
    r, c = x.shape
    if r == rows and c == cols:
        return x
    return jnp.pad(x, ((0, rows - r), (0, cols - c)))


def resmlp_kernel(
    z_ref,
    w1_ref, b1_ref,        # pre_skip Linear(din, dh)
    w2_ref, b2_ref,        # pre_skip Linear(dh, dh)
    w3_ref, b3_ref,        # pre_skip Linear(dh, din)
    ln_g_ref, ln_b_ref,    # LayerNorm(din) gamma / beta (zero-padded)
    w4_ref, b4_ref,        # post_skip Linear(din, dh)
    w5_ref, b5_ref,        # post_skip Linear(dh, dout)
    o_ref,
    *, true_din, matmul_dtype,
):
    f32 = jnp.float32
    z0 = z_ref[...]                                   # (tb, din_p) f32

    def linear(x, w_ref, b_ref):
        # matmul in matmul_dtype (bf16 on v6e/v7x fast path), f32 accumulate,
        # bias add in f32.
        return jnp.dot(x.astype(matmul_dtype), w_ref[...],
                       preferred_element_type=f32) + b_ref[...]

    def leaky(x):  # LeakyReLU(negative_slope=0.01), one mul + one max
        return jnp.maximum(x, 0.01 * x)

    # ---- pre_skip ----
    h = leaky(linear(z0, w1_ref, b1_ref))
    h = leaky(linear(h, w2_ref, b2_ref))
    h = linear(h, w3_ref, b3_ref)                     # (tb, din_p); padded lanes == 0

    # ---- LayerNorm over the true din lanes only (eps=1e-5, biased variance, affine) ----
    din_p = h.shape[-1]
    inv_n = 1.0 / true_din
    mean = jnp.sum(h, axis=-1, keepdims=True) * inv_n      # padded lanes are exact zeros
    if true_din == din_p:
        centered = h - mean
    else:
        lane_ok = jax.lax.broadcasted_iota(jnp.int32, (1, din_p), 1) < true_din
        centered = jnp.where(lane_ok, h - mean, 0.0)
    var = jnp.sum(centered * centered, axis=-1, keepdims=True) * inv_n
    normed = centered * jax.lax.rsqrt(var + 1e-5) * ln_g_ref[...] + ln_b_ref[...]

    # ---- residual (f32) + post_skip ----
    out = normed + z0
    out = leaky(linear(out, w4_ref, b4_ref))
    out = linear(out, w5_ref, b5_ref)

    o_ref[...] = out.astype(o_ref.dtype)


def resmlp_forward(z0, params, *, batch_tile=256, matmul_dtype=jnp.float32):
    """z0: (B, dim_in) float32. params: dict of weights (see init_params)."""
    B, din = z0.shape
    dh = params["w1"].shape[1]
    dout = params["w5"].shape[1]
    f32 = jnp.float32

    # Lane-dense feature dims (multiples of 128).
    din_p = _round_up(din, _LANE)
    dh_p = _round_up(dh, _LANE)
    dout_p = _round_up(dout, _LANE)

    # Batch tile: sublane multiple, sized so the grid has >= 2 steps
    # (pipelining + v7x dual-TensorCore sharding on the "parallel" axis).
    tb = max(_SUBLANE, min(batch_tile, _round_up(pl.cdiv(B, 2), _SUBLANE)))
    Bp = max(_round_up(B, tb), 2 * tb)
    grid = Bp // tb

    # Zero-pad input / weights; weights in matmul_dtype, biases & LN params in f32.
    zp = _pad2d(z0.astype(f32), Bp, din_p)
    w1 = _pad2d(params["w1"], din_p, dh_p).astype(matmul_dtype)
    w2 = _pad2d(params["w2"], dh_p, dh_p).astype(matmul_dtype)
    w3 = _pad2d(params["w3"], dh_p, din_p).astype(matmul_dtype)
    w4 = _pad2d(params["w4"], din_p, dh_p).astype(matmul_dtype)
    w5 = _pad2d(params["w5"], dh_p, dout_p).astype(matmul_dtype)
    b1 = _pad2d(params["b1"].astype(f32), 1, dh_p)
    b2 = _pad2d(params["b2"].astype(f32), 1, dh_p)
    b3 = _pad2d(params["b3"].astype(f32), 1, din_p)
    b4 = _pad2d(params["b4"].astype(f32), 1, dh_p)
    b5 = _pad2d(params["b5"].astype(f32), 1, dout_p)
    ln_g = _pad2d(params["ln_g"].astype(f32), 1, din_p)
    ln_b = _pad2d(params["ln_b"].astype(f32), 1, din_p)

    ordered = [w1, b1, w2, b2, w3, b3, ln_g, ln_b, w4, b4, w5, b5]

    def const_spec(p):
        # Same full block every grid step; single-buffered (no need to double-buffer
        # grid-invariant operands -> halves weight VMEM, key for v7x's 64 MiB).
        return pl.BlockSpec(p.shape, lambda i: (0, 0), pipeline_mode=pl.Buffered(1))

    in_specs = [pl.BlockSpec((tb, din_p), lambda i: (i, 0))]
    in_specs += [const_spec(p) for p in ordered]
    out_spec = pl.BlockSpec((tb, dout_p), lambda i: (i, 0))

    # Explicit VMEM budget: double-buffered activation I/O + single-buffered weights
    # + live intermediates, 2x headroom, clamped to 64 MiB (v7x physical VMEM/TC).
    wbytes = sum(int(p.size) * p.dtype.itemsize for p in ordered)
    io_bytes = 2 * 4 * tb * (din_p + dout_p)
    act_bytes = 4 * tb * (3 * dh_p + 2 * din_p + dout_p)
    vmem_limit = int(min(max(2 * (wbytes + io_bytes + act_bytes), 32 << 20), 64 << 20))

    flops = 2 * Bp * (din_p * dh_p + dh_p * dh_p + dh_p * din_p
                      + din_p * dh_p + dh_p * dout_p)
    cost = pl.CostEstimate(
        flops=int(flops),
        transcendentals=int(Bp),                    # one rsqrt per row
        bytes_accessed=int(zp.size) * 4 + int(wbytes) + int(Bp * dout_p * 4),
    )

    kernel = functools.partial(resmlp_kernel, true_din=din, matmul_dtype=matmul_dtype)

    out = pl.pallas_call(
        kernel,
        out_shape=jax.ShapeDtypeStruct((Bp, dout_p), jnp.float32),
        grid_spec=pltpu.PrefetchScalarGridSpec(
            num_scalar_prefetch=0,
            grid=(grid,),
            in_specs=in_specs,
            out_specs=out_spec,
        ),
        compiler_params=pltpu.CompilerParams(
            dimension_semantics=("parallel",),
            vmem_limit_bytes=vmem_limit,
        ),
        cost_estimate=cost,
    )(zp, *ordered)

    return out[:B, :dout]


def init_params(key, dim_in, dim_out, dim_hidden):
    """Deterministic synthetic parameters (not a checkpoint load).

    Linear weights are stored (in_features, out_features): y = x @ W + b
    (equivalent to PyTorch x @ weight.T + bias). Biases kept as (1, dim).
    """
    ks = jax.random.split(key, 5)
    scale = 0.1

    def lin(k, fan_in, fan_out):
        kw, kb = jax.random.split(k)
        w = scale * jax.random.normal(kw, (fan_in, fan_out), jnp.float32)
        b = scale * jax.random.normal(kb, (1, fan_out), jnp.float32)
        return w, b

    w1, b1 = lin(ks[0], dim_in, dim_hidden)
    w2, b2 = lin(ks[1], dim_hidden, dim_hidden)
    w3, b3 = lin(ks[2], dim_hidden, dim_in)
    w4, b4 = lin(ks[3], dim_in, dim_hidden)
    w5, b5 = lin(ks[4], dim_hidden, dim_out)
    ln_g = jnp.ones((1, dim_in), jnp.float32)
    ln_b = jnp.zeros((1, dim_in), jnp.float32)
    return dict(w1=w1, b1=b1, w2=w2, b2=b2, w3=w3, b3=b3,
                ln_g=ln_g, ln_b=ln_b, w4=w4, b4=b4, w5=w5, b5=b5)


def resmlp_reference(z0, p):
    def leaky(x):
        return jnp.where(x > 0, x, 0.01 * x)
    h = leaky(z0 @ p["w1"] + p["b1"])
    h = leaky(h @ p["w2"] + p["b2"])
    h = h @ p["w3"] + p["b3"]
    mean = jnp.mean(h, axis=-1, keepdims=True)
    var = jnp.mean((h - mean) ** 2, axis=-1, keepdims=True)
    h = (h - mean) * jax.lax.rsqrt(var + 1e-5) * p["ln_g"] + p["ln_b"]
    out = h + z0
    out = leaky(out @ p["w4"] + p["b4"])
    return out @ p["w5"] + p["b5"]


if __name__ == "__main__":
    batch, dim_in, dim_hidden, dim_out = 8, 8, 32, 4

    key = jax.random.PRNGKey(0)
    k_in, k_par = jax.random.split(key)
    z0 = jax.random.normal(k_in, (batch, dim_in), jnp.float32)
    params = init_params(k_par, dim_in, dim_out, dim_hidden)

    ref = resmlp_reference(z0, params)

    # f32 matmul path: tight check vs reference.
    out = jax.block_until_ready(resmlp_forward(z0, params, matmul_dtype=jnp.float32))
    assert out.shape == (batch, dim_out)
    assert jnp.allclose(out, ref, atol=1e-5, rtol=1e-5), "f32 mismatch vs JAX reference"

    # bf16-weight matmul path (v6e/v7x MXU throughput + VMEM lever): loose tolerance
    # vs the f32 reference, LN/residual/activations stay f32 inside the kernel.
    out_bf16 = jax.block_until_ready(
        resmlp_forward(z0, params, matmul_dtype=jnp.bfloat16))
    assert out_bf16.shape == (batch, dim_out)
    assert bool(jnp.all(jnp.isfinite(out_bf16)))
    assert jnp.allclose(out_bf16, ref, atol=1e-1, rtol=1e-1), "bf16 path drifted too far"

    print("KERNEL_OK")
</pallas_src>

<mosaic_0001>
module attributes {stable_mosaic.version = 11 : i64} {
  func.func @resmlp_kernel(%arg0: i32, %arg1: memref<8x128xf32, #tpu.memory_space<vmem>>, %arg2: memref<128x128xf32, #tpu.memory_space<vmem>>, %arg3: memref<1x128xf32, #tpu.memory_space<vmem>>, %arg4: memref<128x128xf32, #tpu.memory_space<vmem>>, %arg5: memref<1x128xf32, #tpu.memory_space<vmem>>, %arg6: memref<128x128xf32, #tpu.memory_space<vmem>>, %arg7: memref<1x128xf32, #tpu.memory_space<vmem>>, %arg8: memref<1x128xf32, #tpu.memory_space<vmem>>, %arg9: memref<1x128xf32, #tpu.memory_space<vmem>>, %arg10: memref<128x128xf32, #tpu.memory_space<vmem>>, %arg11: memref<1x128xf32, #tpu.memory_space<vmem>>, %arg12: memref<128x128xf32, #tpu.memory_space<vmem>>, %arg13: memref<1x128xf32, #tpu.memory_space<vmem>>, %arg14: memref<8x128xf32, #tpu.memory_space<vmem>>) attributes {dimension_semantics = [#tpu.dimension_semantics<parallel>], iteration_bounds = array<i64: 2>, scalar_prefetch = 0 : i64, scratch_operands = 0 : i64, tpu.core_type = #tpu.core_type<tc>, window_params = [{transform_indices = @transform_0, window_bounds = array<i64: 8, 128>}, {pipeline_mode = #tpu.pipeline_mode<synchronous>, transform_indices = @transform_1, window_bounds = array<i64: 128, 128>}, {pipeline_mode = #tpu.pipeline_mode<synchronous>, transform_indices = @transform_2, window_bounds = array<i64: 1, 128>}, {pipeline_mode = #tpu.pipeline_mode<synchronous>, transform_indices = @transform_3, window_bounds = array<i64: 128, 128>}, {pipeline_mode = #tpu.pipeline_mode<synchronous>, transform_indices = @transform_4, window_bounds = array<i64: 1, 128>}, {pipeline_mode = #tpu.pipeline_mode<synchronous>, transform_indices = @transform_5, window_bounds = array<i64: 128, 128>}, {pipeline_mode = #tpu.pipeline_mode<synchronous>, transform_indices = @transform_6, window_bounds = array<i64: 1, 128>}, {pipeline_mode = #tpu.pipeline_mode<synchronous>, transform_indices = @transform_7, window_bounds = array<i64: 1, 128>}, {pipeline_mode = #tpu.pipeline_mode<synchronous>, transform_indices = @transform_8, window_bounds = array<i64: 1, 128>}, {pipeline_mode = #tpu.pipeline_mode<synchronous>, transform_indices = @transform_9, window_bounds = array<i64: 128, 128>}, {pipeline_mode = #tpu.pipeline_mode<synchronous>, transform_indices = @transform_10, window_bounds = array<i64: 1, 128>}, {pipeline_mode = #tpu.pipeline_mode<synchronous>, transform_indices = @transform_11, window_bounds = array<i64: 128, 128>}, {pipeline_mode = #tpu.pipeline_mode<synchronous>, transform_indices = @transform_12, window_bounds = array<i64: 1, 128>}, {transform_indices = @transform_13, window_bounds = array<i64: 8, 128>}]} {
    %c0 = arith.constant 0 : index
    %c0_0 = arith.constant 0 : index
    %0 = vector.load %arg1[%c0, %c0_0] : memref<8x128xf32, #tpu.memory_space<vmem>>, vector<8x128xf32>
    %c0_1 = arith.constant 0 : index
    %c0_2 = arith.constant 0 : index
    %1 = vector.load %arg2[%c0_1, %c0_2] : memref<128x128xf32, #tpu.memory_space<vmem>>, vector<128x128xf32>
    %cst = arith.constant dense<0.000000e+00> : vector<8x128xf32>
    %2 = tpu.matmul %0, %1, %cst {dimension_numbers = #tpu.dot_dimension_numbers<[1], [0], [0], [1], [0, 0, 1, 1], [], []>} : vector<8x128xf32>, vector<128x128xf32>, vector<8x128xf32> -> vector<8x128xf32>
    %c0_3 = arith.constant 0 : index
    %c0_4 = arith.constant 0 : index
    %3 = vector.load %arg3[%c0_3, %c0_4] : memref<1x128xf32, #tpu.memory_space<vmem>>, vector<1x128xf32>
    %4 = vector.broadcast %3 : vector<1x128xf32> to vector<8x128xf32>
    %5 = arith.addf %2, %4 : vector<8x128xf32>
    %cst_5 = arith.constant 0.00999999977 : f32
    %6 = vector.broadcast %cst_5 : f32 to vector<8x128xf32>
    %7 = arith.mulf %6, %5 : vector<8x128xf32>
    %8 = arith.maximumf %5, %7 : vector<8x128xf32>
    %c0_6 = arith.constant 0 : index
    %c0_7 = arith.constant 0 : index
    %9 = vector.load %arg4[%c0_6, %c0_7] : memref<128x128xf32, #tpu.memory_space<vmem>>, vector<128x128xf32>
    %cst_8 = arith.constant dense<0.000000e+00> : vector<8x128xf32>
    %10 = tpu.matmul %8, %9, %cst_8 {dimension_numbers = #tpu.dot_dimension_numbers<[1], [0], [0], [1], [0, 0, 1, 1], [], []>} : vector<8x128xf32>, vector<128x128xf32>, vector<8x128xf32> -> vector<8x128xf32>
    %c0_9 = arith.constant 0 : index
    %c0_10 = arith.constant 0 : index
    %11 = vector.load %arg5[%c0_9, %c0_10] : memref<1x128xf32, #tpu.memory_space<vmem>>, vector<1x128xf32>
    %12 = vector.broadcast %11 : vector<1x128xf32> to vector<8x128xf32>
    %13 = arith.addf %10, %12 : vector<8x128xf32>
    %cst_11 = arith.constant 0.00999999977 : f32
    %14 = vector.broadcast %cst_11 : f32 to vector<8x128xf32>
    %15 = arith.mulf %14, %13 : vector<8x128xf32>
    %16 = arith.maximumf %13, %15 : vector<8x128xf32>
    %c0_12 = arith.constant 0 : index
    %c0_13 = arith.constant 0 : index
    %17 = vector.load %arg6[%c0_12, %c0_13] : memref<128x128xf32, #tpu.memory_space<vmem>>, vector<128x128xf32>
    %cst_14 = arith.constant dense<0.000000e+00> : vector<8x128xf32>
    %18 = tpu.matmul %16, %17, %cst_14 {dimension_numbers = #tpu.dot_dimension_numbers<[1], [0], [0], [1], [0, 0, 1, 1], [], []>} : vector<8x128xf32>, vector<128x128xf32>, vector<8x128xf32> -> vector<8x128xf32>
    %c0_15 = arith.constant 0 : index
    %c0_16 = arith.constant 0 : index
    %19 = vector.load %arg7[%c0_15, %c0_16] : memref<1x128xf32, #tpu.memory_space<vmem>>, vector<1x128xf32>
    %20 = vector.broadcast %19 : vector<1x128xf32> to vector<8x128xf32>
    %21 = arith.addf %18, %20 : vector<8x128xf32>
    %cst_17 = arith.constant dense<0.000000e+00> : vector<8xf32>
    %22 = vector.multi_reduction <add>, %21, %cst_17 [1] : vector<8x128xf32> to vector<8xf32>
    %23 = vector.shape_cast %22 : vector<8xf32> to vector<8x1xf32>
    %cst_18 = arith.constant 1.250000e-01 : f32
    %24 = vector.broadcast %cst_18 : f32 to vector<8x1xf32>
    %25 = arith.mulf %23, %24 : vector<8x1xf32>
    %26 = tpu.iota {dimensions = array<i32: 1>} : vector<1x128xi32>
    %c8_i32 = arith.constant 8 : i32
    %27 = vector.broadcast %c8_i32 : i32 to vector<1x128xi32>
    %28 = arith.cmpi slt, %26, %27 : vector<1x128xi32>
    %29 = vector.broadcast %25 : vector<8x1xf32> to vector<8x128xf32>
    %30 = arith.subf %21, %29 : vector<8x128xf32>
    %cst_19 = arith.constant 0.000000e+00 : f32
    %31 = vector.shape_cast %28 : vector<1x128xi1> to vector<1x128xi1>
    %32 = vector.broadcast %31 : vector<1x128xi1> to vector<8x128xi1>
    %33 = vector.broadcast %cst_19 : f32 to vector<8x128xf32>
    %34 = arith.select %32, %30, %33 : vector<8x128xi1>, vector<8x128xf32>
    %35 = arith.mulf %34, %34 : vector<8x128xf32>
    %cst_20 = arith.constant dense<0.000000e+00> : vector<8xf32>
    %36 = vector.multi_reduction <add>, %35, %cst_20 [1] : vector<8x128xf32> to vector<8xf32>
    %37 = vector.shape_cast %36 : vector<8xf32> to vector<8x1xf32>
    %cst_21 = arith.constant 1.250000e-01 : f32
    %38 = vector.broadcast %cst_21 : f32 to vector<8x1xf32>
    %39 = arith.mulf %37, %38 : vector<8x1xf32>
    %cst_22 = arith.constant 9.99999974E-6 : f32
    %40 = vector.broadcast %cst_22 : f32 to vector<8x1xf32>
    %41 = arith.addf %39, %40 : vector<8x1xf32>
    %42 = math.rsqrt %41 : vector<8x1xf32>
    %43 = vector.broadcast %42 : vector<8x1xf32> to vector<8x128xf32>
    %44 = arith.mulf %34, %43 : vector<8x128xf32>
    %c0_23 = arith.constant 0 : index
    %c0_24 = arith.constant 0 : index
    %45 = vector.load %arg8[%c0_23, %c0_24] : memref<1x128xf32, #tpu.memory_space<vmem>>, vector<1x128xf32>
    %46 = vector.broadcast %45 : vector<1x128xf32> to vector<8x128xf32>
    %47 = arith.mulf %44, %46 : vector<8x128xf32>
    %c0_25 = arith.constant 0 : index
    %c0_26 = arith.constant 0 : index
    %48 = vector.load %arg9[%c0_25, %c0_26] : memref<1x128xf32, #tpu.memory_space<vmem>>, vector<1x128xf32>
    %49 = vector.broadcast %48 : vector<1x128xf32> to vector<8x128xf32>
    %50 = arith.addf %47, %49 : vector<8x128xf32>
    %51 = arith.addf %50, %0 : vector<8x128xf32>
    %c0_27 = arith.constant 0 : index
    %c0_28 = arith.constant 0 : index
    %52 = vector.load %arg10[%c0_27, %c0_28] : memref<128x128xf32, #tpu.memory_space<vmem>>, vector<128x128xf32>
    %cst_29 = arith.constant dense<0.000000e+00> : vector<8x128xf32>
    %53 = tpu.matmul %51, %52, %cst_29 {dimension_numbers = #tpu.dot_dimension_numbers<[1], [0], [0], [1], [0, 0, 1, 1], [], []>} : vector<8x128xf32>, vector<128x128xf32>, vector<8x128xf32> -> vector<8x128xf32>
    %c0_30 = arith.constant 0 : index
    %c0_31 = arith.constant 0 : index
    %54 = vector.load %arg11[%c0_30, %c0_31] : memref<1x128xf32, #tpu.memory_space<vmem>>, vector<1x128xf32>
    %55 = vector.broadcast %54 : vector<1x128xf32> to vector<8x128xf32>
    %56 = arith.addf %53, %55 : vector<8x128xf32>
    %cst_32 = arith.constant 0.00999999977 : f32
    %57 = vector.broadcast %cst_32 : f32 to vector<8x128xf32>
    %58 = arith.mulf %57, %56 : vector<8x128xf32>
    %59 = arith.maximumf %56, %58 : vector<8x128xf32>
    %c0_33 = arith.constant 0 : index
    %c0_34 = arith.constant 0 : index
    %60 = vector.load %arg12[%c0_33, %c0_34] : memref<128x128xf32, #tpu.memory_space<vmem>>, vector<128x128xf32>
    %cst_35 = arith.constant dense<0.000000e+00> : vector<8x128xf32>
    %61 = tpu.matmul %59, %60, %cst_35 {dimension_numbers = #tpu.dot_dimension_numbers<[1], [0], [0], [1], [0, 0, 1, 1], [], []>} : vector<8x128xf32>, vector<128x128xf32>, vector<8x128xf32> -> vector<8x128xf32>
    %c0_36 = arith.constant 0 : index
    %c0_37 = arith.constant 0 : index
    %62 = vector.load %arg13[%c0_36, %c0_37] : memref<1x128xf32, #tpu.memory_space<vmem>>, vector<1x128xf32>
    %63 = vector.broadcast %62 : vector<1x128xf32> to vector<8x128xf32>
    %64 = arith.addf %61, %63 : vector<8x128xf32>
    %c0_38 = arith.constant 0 : index
    %c0_39 = arith.constant 0 : index
    %65 = vector.load %arg14[%c0_38, %c0_39] : memref<8x128xf32, #tpu.memory_space<vmem>>, vector<8x128xf32>
    tpu.vector_store %arg14[%c0_38, %c0_39], %64 {strides = array<i32>} : memref<8x128xf32, #tpu.memory_space<vmem>>, vector<8x128xf32>,
    return
  }
  func.func @transform_0(%arg0: i32) -> (i32, i32) {
    %c0_i32 = arith.constant 0 : i32
    %c0_i32_0 = arith.constant 0 : i32
    return %arg0, %c0_i32 : i32, i32
  }
  func.func @transform_1(%arg0: i32) -> (i32, i32) {
    %c0_i32 = arith.constant 0 : i32
    %c0_i32_0 = arith.constant 0 : i32
    %c0_i32_1 = arith.constant 0 : i32
    return %c0_i32, %c0_i32_0 : i32, i32
  }
  func.func @transform_2(%arg0: i32) -> (i32, i32) {
    %c0_i32 = arith.constant 0 : i32
    %c0_i32_0 = arith.constant 0 : i32
    %c0_i32_1 = arith.constant 0 : i32
    return %c0_i32, %c0_i32_0 : i32, i32
  }
  func.func @transform_3(%arg0: i32) -> (i32, i32) {
    %c0_i32 = arith.constant 0 : i32
    %c0_i32_0 = arith.constant 0 : i32
    %c0_i32_1 = arith.constant 0 : i32
    return %c0_i32, %c0_i32_0 : i32, i32
  }
  func.func @transform_4(%arg0: i32) -> (i32, i32) {
    %c0_i32 = arith.constant 0 : i32
    %c0_i32_0 = arith.constant 0 : i32
    %c0_i32_1 = arith.constant 0 : i32
    return %c0_i32, %c0_i32_0 : i32, i32
  }
  func.func @transform_5(%arg0: i32) -> (i32, i32) {
    %c0_i32 = arith.constant 0 : i32
    %c0_i32_0 = arith.constant 0 : i32
    %c0_i32_1 = arith.constant 0 : i32
    return %c0_i32, %c0_i32_0 : i32, i32
  }
  func.func @transform_6(%arg0: i32) -> (i32, i32) {
    %c0_i32 = arith.constant 0 : i32
    %c0_i32_0 = arith.constant 0 : i32
    %c0_i32_1 = arith.constant 0 : i32
    return %c0_i32, %c0_i32_0 : i32, i32
  }
  func.func @transform_7(%arg0: i32) -> (i32, i32) {
    %c0_i32 = arith.constant 0 : i32
    %c0_i32_0 = arith.constant 0 : i32
    %c0_i32_1 = arith.constant 0 : i32
    return %c0_i32, %c0_i32_0 : i32, i32
  }
  func.func @transform_8(%arg0: i32) -> (i32, i32) {
    %c0_i32 = arith.constant 0 : i32
    %c0_i32_0 = arith.constant 0 : i32
    %c0_i32_1 = arith.constant 0 : i32
    return %c0_i32, %c0_i32_0 : i32, i32
  }
  func.func @transform_9(%arg0: i32) -> (i32, i32) {
    %c0_i32 = arith.constant 0 : i32
    %c0_i32_0 = arith.constant 0 : i32
    %c0_i32_1 = arith.constant 0 : i32
    return %c0_i32, %c0_i32_0 : i32, i32
  }
  func.func @transform_10(%arg0: i32) -> (i32, i32) {
    %c0_i32 = arith.constant 0 : i32
    %c0_i32_0 = arith.constant 0 : i32
    %c0_i32_1 = arith.constant 0 : i32
    return %c0_i32, %c0_i32_0 : i32, i32
  }
  func.func @transform_11(%arg0: i32) -> (i32, i32) {
    %c0_i32 = arith.constant 0 : i32
    %c0_i32_0 = arith.constant 0 : i32
    %c0_i32_1 = arith.constant 0 : i32
    return %c0_i32, %c0_i32_0 : i32, i32
  }
  func.func @transform_12(%arg0: i32) -> (i32, i32) {
    %c0_i32 = arith.constant 0 : i32
    %c0_i32_0 = arith.constant 0 : i32
    %c0_i32_1 = arith.constant 0 : i32
    return %c0_i32, %c0_i32_0 : i32, i32
  }
  func.func @transform_13(%arg0: i32) -> (i32, i32) {
    %c0_i32 = arith.constant 0 : i32
    %c0_i32_0 = arith.constant 0 : i32
    return %arg0, %c0_i32 : i32, i32
  }
}

</mosaic_0001>

<llo_original>
// kernel: tpu_custom_call.1
$region0: #{tpu_custom_call.1}
  #allocation0 [shape = 'u32[]', space=smem, size = 0x4, offset = 0x4, fixed_abs, tag = 'smem constant byte address 0x4 - core index']
  #allocation1 [shape = 'u32[144,128]{1,0:T(1,128)}', space=vmem, size = 0x12000, scoped, tag = 'internal scratch']
  %s0 = inlined_call_operand.hbm [shape: f32[16,128], index: 0, kind: input, shape index: {}]
  %s1 = inlined_call_operand.hbm [shape: f32[128,128], index: 1, kind: input, shape index: {}]
  %s2 = inlined_call_operand.vmem [shape: f32[1,128], index: 2, kind: input, shape index: {}]
  %s3 = inlined_call_operand.hbm [shape: f32[128,128], index: 3, kind: input, shape index: {}]
  %s4 = inlined_call_operand.vmem [shape: f32[1,128], index: 4, kind: input, shape index: {}]
  %s5 = inlined_call_operand.hbm [shape: f32[128,128], index: 5, kind: input, shape index: {}]
  %s6 = inlined_call_operand.vmem [shape: f32[1,128], index: 6, kind: input, shape index: {}]
  %s7 = inlined_call_operand.vmem [shape: f32[1,128], index: 7, kind: input, shape index: {}]
  %s8 = inlined_call_operand.vmem [shape: f32[1,128], index: 8, kind: input, shape index: {}]
  %s9 = inlined_call_operand.hbm [shape: f32[128,128], index: 9, kind: input, shape index: {}]
  %s10 = inlined_call_operand.vmem [shape: f32[1,128], index: 10, kind: input, shape index: {}]
  %s11 = inlined_call_operand.hbm [shape: f32[128,128], index: 11, kind: input, shape index: {}]
  %s12 = inlined_call_operand.vmem [shape: f32[1,128], index: 12, kind: input, shape index: {}]
  %s13 = inlined_call_operand.hbm [shape: f32[16,128], index: 13, kind: output, shape index: {}]
  %s14 = sld [smem:[#allocation0]]
  $region109: #{tpu_custom_call.1} parent=0
    _
  %s16 = ssub.s32 1, %s14
  %s17 = scalar_select 0, %s16, %s14
  $region1: #{tpu_custom_call.1} parent=0
    #allocation2 [shape = 'u8[8192]{0}', space=vmem, size = 0x2000, scoped, tag = 'input window, operand 0']
    #allocation3 [shape = 's32[2]{0}', space=sflag, size = 0x8, scoped, tag = 'scoped memory for tpu_custom_call.1']
    #allocation4 [shape = 's32[2]{0}', space=sflag, size = 0x8, scoped, tag = 'scoped memory for tpu_custom_call.1']
    #allocation5 [shape = 'u8[65536]{0}', space=vmem, size = 0x10000, scoped, tag = 'input window, operand 1, single buffered']
    #allocation6 [shape = 's32[1]{0}', space=sflag, size = 0x4, scoped, tag = 'scoped memory for tpu_custom_call.1']
    #allocation7 [shape = 'u8[65536]{0}', space=vmem, size = 0x10000, scoped, tag = 'input window, operand 3, single buffered']
    #allocation8 [shape = 'u8[65536]{0}', space=vmem, size = 0x10000, scoped, tag = 'input window, operand 5, single buffered']
    #allocation9 [shape = 's32[1]{0}', space=sflag, size = 0x4, scoped, tag = 'scoped memory for tpu_custom_call.1']
    #allocation10 [shape = 'u8[65536]{0}', space=vmem, size = 0x10000, scoped, tag = 'input window, operand 9, single buffered']
    #allocation11 [shape = 'u8[65536]{0}', space=vmem, size = 0x10000, scoped, tag = 'input window, operand 11, single buffered']
    #allocation12 [shape = 's32[1]{0}', space=sflag, size = 0x4, scoped, tag = 'scoped memory for tpu_custom_call.1']
    #allocation13 [shape = 'u8[8192]{0}', space=vmem, size = 0x2000, scoped, tag = 'output window, operand 0']
    %18 = vsyncpa [#allocation3], 0
    %s19 = scalar_lea.sflag [#allocation3], 1
    %20 = vsyncpa %s19, 0
    %21 = vsyncpa [#allocation6], 0
    %22 = vsyncpa [#allocation9], 0
    %23 = vsyncpa [#allocation12], 0
    %24 = vsyncpa [#allocation4], 0
    %s25 = scalar_lea.sflag [#allocation4], 1
    %26 = vsyncpa %s25, 0
    loop: start=0, step=1, limit=4
    $region2: #{tpu_custom_call.1} parent=1 // loop_pre_header
      _
    $region3: #{tpu_custom_call.1} parent=1 // loop_header
      %s28 = sphi 0, %s32
      %p29 = scmp.ge.s32.totalorder %s28, 4
      %s38 = sphi 0, %s40
      %s41 = sphi 0, %s38
      %s42 = sphi 0, %s41
      %s58 = sphi 0, %s42
      %s62 = sphi 0, %s62
      %s64 = sphi 0, %s62
      %s65 = sphi 0, %s64
      %s79 = sphi 0, %s65
      %s83 = sphi 0, %s83
      %s85 = sphi 0, %s83
      %s86 = sphi 0, %s85
      %s100 = sphi 0, %s86
      %s104 = sphi 0, %s104
      %s106 = sphi 0, %s104
      %s107 = sphi 0, %s106
      %s121 = sphi 0, %s107
      %s125 = sphi 0, %s125
      %s127 = sphi 0, %s125
      %s128 = sphi 0, %s127
      %s142 = sphi 0, %s128
      %s146 = sphi 0, %s146
      %s148 = sphi 0, %s146
      %s149 = sphi 0, %s148
      %s163 = sphi 0, %s149
      %s167 = sphi 0, %s167
      %s169 = sphi 0, %s167
      %s170 = sphi 0, %s169
      %s184 = sphi 0, %s170
      %s188 = sphi 0, %s188
      %s190 = sphi 0, %s188
      %s191 = sphi 0, %s190
      %s205 = sphi 0, %s191
      %s209 = sphi 0, %s209
      %s211 = sphi 0, %s209
      %s212 = sphi 0, %s211
      %s226 = sphi 0, %s212
      %s230 = sphi 0, %s230
      %s232 = sphi 0, %s230
      %s233 = sphi 0, %s232
      %s247 = sphi 0, %s233
      %s251 = sphi 0, %s251
      %s253 = sphi 0, %s251
      %s254 = sphi 0, %s253
      %s268 = sphi 0, %s254
      %s272 = sphi 0, %s272
      %s274 = sphi 0, %s272
      %s275 = sphi 0, %s274
      %s289 = sphi 0, %s275
      %s293 = sphi 0, %s293
      %s295 = sphi 0, %s293
      %s296 = sphi 0, %s295
      %s310 = sphi 0, %s296
      %s316 = sphi 0, %s318
      %s319 = sphi 0, %s316
      %s320 = sphi 0, %s319
      %s336 = sphi 0, %s320
    $region4: #{tpu_custom_call.1} parent=1 // loop_header_branch
      %31 = sbr.rel (%p29) target = $region8
    $region5: #{tpu_custom_call.1} parent=1 // loop_body
      %s33 = ssub.s32 %s28, 1
      %s34 = ssub.s32 %s28, 2
      %s35 = sadd.s32 %s28, 1
      %s36 = ssub.s32 %s28, %s35
      %p37 = scmp.eq.s32.totalorder %s36, 0
      %s39 = sadd.s32 %s38, 1
      %s40 = scalar_select %p37, %s38, %s39
      %p43 = pneg %p37
      %p44 = scmp.eq.s32.totalorder %s28, 1
      %p45 = por %p43, %p44
      %p46 = scmp.ne.s32.totalorder %s38, %s41
      %p47 = scmp.eq.s32.totalorder %s28, 0
      %p48 = por %p46, %p47
      %p49 = scmp.ne.s32.totalorder %s38, %s41
      %p50 = scmp.eq.s32.totalorder %s33, 1
      %p51 = por %p49, %p50
      %p52 = scmp.ne.s32.totalorder %s41, %s42
      %p53 = scmp.eq.s32.totalorder %s33, 0
      %p54 = por %p52, %p53
      %p55 = scmp.ne.s32.totalorder %s41, %s42
      %p56 = scmp.eq.s32.totalorder %s34, 1
      %p57 = por %p55, %p56
      %p59 = scmp.ne.s32.totalorder %s42, %s58
      %p60 = scmp.eq.s32.totalorder %s34, 0
      %p61 = por %p59, %p60
      %s63 = sadd.s32 %s62, 1
      %p66 = scmp.eq.s32.totalorder %s28, 1
      %p67 = scmp.ne.s32.totalorder %s62, %s64
      %p68 = scmp.eq.s32.totalorder %s28, 0
      %p69 = por %p67, %p68
      %p70 = scmp.ne.s32.totalorder %s62, %s64
      %p71 = scmp.eq.s32.totalorder %s33, 1
      %p72 = por %p70, %p71
      %p73 = scmp.ne.s32.totalorder %s64, %s65
      %p74 = scmp.eq.s32.totalorder %s33, 0
      %p75 = por %p73, %p74
      %p76 = scmp.ne.s32.totalorder %s64, %s65
      %p77 = scmp.eq.s32.totalorder %s34, 1
      %p78 = por %p76, %p77
      %p80 = scmp.ne.s32.totalorder %s65, %s79
      %p81 = scmp.eq.s32.totalorder %s34, 0
      %p82 = por %p80, %p81
      %s84 = sadd.s32 %s83, 1
      %p87 = scmp.eq.s32.totalorder %s28, 1
      %p88 = scmp.ne.s32.totalorder %s83, %s85
      %p89 = scmp.eq.s32.totalorder %s28, 0
      %p90 = por %p88, %p89
      %p91 = scmp.ne.s32.totalorder %s83, %s85
      %p92 = scmp.eq.s32.totalorder %s33, 1
      %p93 = por %p91, %p92
      %p94 = scmp.ne.s32.totalorder %s85, %s86
      %p95 = scmp.eq.s32.totalorder %s33, 0
      %p96 = por %p94, %p95
      %p97 = scmp.ne.s32.totalorder %s85, %s86
      %p98 = scmp.eq.s32.totalorder %s34, 1
      %p99 = por %p97, %p98
      %p101 = scmp.ne.s32.totalorder %s86, %s100
      %p102 = scmp.eq.s32.totalorder %s34, 0
      %p103 = por %p101, %p102
      %s105 = sadd.s32 %s104, 1
      %p108 = scmp.eq.s32.totalorder %s28, 1
      %p109 = scmp.ne.s32.totalorder %s104, %s106
      %p110 = scmp.eq.s32.totalorder %s28, 0
      %p111 = por %p109, %p110
      %p112 = scmp.ne.s32.totalorder %s104, %s106
      %p113 = scmp.eq.s32.totalorder %s33, 1
      %p114 = por %p112, %p113
      %p115 = scmp.ne.s32.totalorder %s106, %s107
      %p116 = scmp.eq.s32.totalorder %s33, 0
      %p117 = por %p115, %p116
      %p118 = scmp.ne.s32.totalorder %s106, %s107
      %p119 = scmp.eq.s32.totalorder %s34, 1
      %p120 = por %p118, %p119
      %p122 = scmp.ne.s32.totalorder %s107, %s121
      %p123 = scmp.eq.s32.totalorder %s34, 0
      %p124 = por %p122, %p123
      %s126 = sadd.s32 %s125, 1
      %p129 = scmp.eq.s32.totalorder %s28, 1
      %p130 = scmp.ne.s32.totalorder %s125, %s127
      %p131 = scmp.eq.s32.totalorder %s28, 0
      %p132 = por %p130, %p131
      %p133 = scmp.ne.s32.totalorder %s125, %s127
      %p134 = scmp.eq.s32.totalorder %s33, 1
      %p135 = por %p133, %p134
      %p136 = scmp.ne.s32.totalorder %s127, %s128
      %p137 = scmp.eq.s32.totalorder %s33, 0
      %p138 = por %p136, %p137
      %p139 = scmp.ne.s32.totalorder %s127, %s128
      %p140 = scmp.eq.s32.totalorder %s34, 1
      %p141 = por %p139, %p140
      %p143 = scmp.ne.s32.totalorder %s128, %s142
      %p144 = scmp.eq.s32.totalorder %s34, 0
      %p145 = por %p143, %p144
      %s147 = sadd.s32 %s146, 1
      %p150 = scmp.eq.s32.totalorder %s28, 1
      %p151 = scmp.ne.s32.totalorder %s146, %s148
      %p152 = scmp.eq.s32.totalorder %s28, 0
      %p153 = por %p151, %p152
      %p154 = scmp.ne.s32.totalorder %s146, %s148
      %p155 = scmp.eq.s32.totalorder %s33, 1
      %p156 = por %p154, %p155
      %p157 = scmp.ne.s32.totalorder %s148, %s149
      %p158 = scmp.eq.s32.totalorder %s33, 0
      %p159 = por %p157, %p158
      %p160 = scmp.ne.s32.totalorder %s148, %s149
      %p161 = scmp.eq.s32.totalorder %s34, 1
      %p162 = por %p160, %p161
      %p164 = scmp.ne.s32.totalorder %s149, %s163
      %p165 = scmp.eq.s32.totalorder %s34, 0
      %p166 = por %p164, %p165
      %s168 = sadd.s32 %s167, 1
      %p171 = scmp.eq.s32.totalorder %s28, 1
      %p172 = scmp.ne.s32.totalorder %s167, %s169
      %p173 = scmp.eq.s32.totalorder %s28, 0
      %p174 = por %p172, %p173
      %p175 = scmp.ne.s32.totalorder %s167, %s169
      %p176 = scmp.eq.s32.totalorder %s33, 1
      %p177 = por %p175, %p176
      %p178 = scmp.ne.s32.totalorder %s169, %s170
      %p179 = scmp.eq.s32.totalorder %s33, 0
      %p180 = por %p178, %p179
      %p181 = scmp.ne.s32.totalorder %s169, %s170
      %p182 = scmp.eq.s32.totalorder %s34, 1
      %p183 = por %p181, %p182
      %p185 = scmp.ne.s32.totalorder %s170, %s184
      %p186 = scmp.eq.s32.totalorder %s34, 0
      %p187 = por %p185, %p186
      %s189 = sadd.s32 %s188, 1
      %p192 = scmp.eq.s32.totalorder %s28, 1
      %p193 = scmp.ne.s32.totalorder %s188, %s190
      %p194 = scmp.eq.s32.totalorder %s28, 0
      %p195 = por %p193, %p194
      %p196 = scmp.ne.s32.totalorder %s188, %s190
      %p197 = scmp.eq.s32.totalorder %s33, 1
      %p198 = por %p196, %p197
      %p199 = scmp.ne.s32.totalorder %s190, %s191
      %p200 = scmp.eq.s32.totalorder %s33, 0
      %p201 = por %p199, %p200
      %p202 = scmp.ne.s32.totalorder %s190, %s191
      %p203 = scmp.eq.s32.totalorder %s34, 1
      %p204 = por %p202, %p203
      %p206 = scmp.ne.s32.totalorder %s191, %s205
      %p207 = scmp.eq.s32.totalorder %s34, 0
      %p208 = por %p206, %p207
      %s210 = sadd.s32 %s209, 1
      %p213 = scmp.eq.s32.totalorder %s28, 1
      %p214 = scmp.ne.s32.totalorder %s209, %s211
      %p215 = scmp.eq.s32.totalorder %s28, 0
      %p216 = por %p214, %p215
      %p217 = scmp.ne.s32.totalorder %s209, %s211
      %p218 = scmp.eq.s32.totalorder %s33, 1
      %p219 = por %p217, %p218
      %p220 = scmp.ne.s32.totalorder %s211, %s212
      %p221 = scmp.eq.s32.totalorder %s33, 0
      %p222 = por %p220, %p221
      %p223 = scmp.ne.s32.totalorder %s211, %s212
      %p224 = scmp.eq.s32.totalorder %s34, 1
      %p225 = por %p223, %p224
      %p227 = scmp.ne.s32.totalorder %s212, %s226
      %p228 = scmp.eq.s32.totalorder %s34, 0
      %p229 = por %p227, %p228
      %s231 = sadd.s32 %s230, 1
      %p234 = scmp.eq.s32.totalorder %s28, 1
      %p235 = scmp.ne.s32.totalorder %s230, %s232
      %p236 = scmp.eq.s32.totalorder %s28, 0
      %p237 = por %p235, %p236
      %p238 = scmp.ne.s32.totalorder %s230, %s232
      %p239 = scmp.eq.s32.totalorder %s33, 1
      %p240 = por %p238, %p239
      %p241 = scmp.ne.s32.totalorder %s232, %s233
      %p242 = scmp.eq.s32.totalorder %s33, 0
      %p243 = por %p241, %p242
      %p244 = scmp.ne.s32.totalorder %s232, %s233
      %p245 = scmp.eq.s32.totalorder %s34, 1
      %p246 = por %p244, %p245
      %p248 = scmp.ne.s32.totalorder %s233, %s247
      %p249 = scmp.eq.s32.totalorder %s34, 0
      %p250 = por %p248, %p249
      %s252 = sadd.s32 %s251, 1
      %p255 = scmp.eq.s32.totalorder %s28, 1
      %p256 = scmp.ne.s32.totalorder %s251, %s253
      %p257 = scmp.eq.s32.totalorder %s28, 0
      %p258 = por %p256, %p257
      %p259 = scmp.ne.s32.totalorder %s251, %s253
      %p260 = scmp.eq.s32.totalorder %s33, 1
      %p261 = por %p259, %p260
      %p262 = scmp.ne.s32.totalorder %s253, %s254
      %p263 = scmp.eq.s32.totalorder %s33, 0
      %p264 = por %p262, %p263
      %p265 = scmp.ne.s32.totalorder %s253, %s254
      %p266 = scmp.eq.s32.totalorder %s34, 1
      %p267 = por %p265, %p266
      %p269 = scmp.ne.s32.totalorder %s254, %s268
      %p270 = scmp.eq.s32.totalorder %s34, 0
      %p271 = por %p269, %p270
      %s273 = sadd.s32 %s272, 1
      %p276 = scmp.eq.s32.totalorder %s28, 1
      %p277 = scmp.ne.s32.totalorder %s272, %s274
      %p278 = scmp.eq.s32.totalorder %s28, 0
      %p279 = por %p277, %p278
      %p280 = scmp.ne.s32.totalorder %s272, %s274
      %p281 = scmp.eq.s32.totalorder %s33, 1
      %p282 = por %p280, %p281
      %p283 = scmp.ne.s32.totalorder %s274, %s275
      %p284 = scmp.eq.s32.totalorder %s33, 0
      %p285 = por %p283, %p284
      %p286 = scmp.ne.s32.totalorder %s274, %s275
      %p287 = scmp.eq.s32.totalorder %s34, 1
      %p288 = por %p286, %p287
      %p290 = scmp.ne.s32.totalorder %s275, %s289
      %p291 = scmp.eq.s32.totalorder %s34, 0
      %p292 = por %p290, %p291
      %s294 = sadd.s32 %s293, 1
      %p297 = scmp.eq.s32.totalorder %s28, 1
      %p298 = scmp.ne.s32.totalorder %s293, %s295
      %p299 = scmp.eq.s32.totalorder %s28, 0
      %p300 = por %p298, %p299
      %p301 = scmp.ne.s32.totalorder %s293, %s295
      %p302 = scmp.eq.s32.totalorder %s33, 1
      %p303 = por %p301, %p302
      %p304 = scmp.ne.s32.totalorder %s295, %s296
      %p305 = scmp.eq.s32.totalorder %s33, 0
      %p306 = por %p304, %p305
      %p307 = scmp.ne.s32.totalorder %s295, %s296
      %p308 = scmp.eq.s32.totalorder %s34, 1
      %p309 = por %p307, %p308
      %p311 = scmp.ne.s32.totalorder %s296, %s310
      %p312 = scmp.eq.s32.totalorder %s34, 0
      %p313 = por %p311, %p312
      %s314 = ssub.s32 %s28, %s35
      %p315 = scmp.eq.s32.totalorder %s314, 0
      %s317 = sadd.s32 %s316, 1
      %s318 = scalar_select %p315, %s316, %s317
      %p321 = pneg %p315
      %p322 = scmp.eq.s32.totalorder %s28, 1
      %p323 = por %p321, %p322
      %p324 = scmp.ne.s32.totalorder %s316, %s319
      %p325 = scmp.eq.s32.totalorder %s28, 0
      %p326 = por %p324, %p325
      %p327 = scmp.ne.s32.totalorder %s316, %s319
      %p328 = scmp.eq.s32.totalorder %s33, 1
      %p329 = por %p327, %p328
      %p330 = scmp.ne.s32.totalorder %s319, %s320
      %p331 = scmp.eq.s32.totalorder %s33, 0
      %p332 = por %p330, %p331
      %p333 = scmp.ne.s32.totalorder %s319, %s320
      %p334 = scmp.eq.s32.totalorder %s34, 1
      %p335 = por %p333, %p334
      %p337 = scmp.ne.s32.totalorder %s320, %s336
      %p338 = scmp.eq.s32.totalorder %s34, 0
      %p339 = por %p337, %p338
      %p340 = scmp.le.s32.totalorder 1, %s28
      %p341 = scmp.lt.s32.totalorder %s28, 3
      %p342 = pnand %p340, %p341
      %p343 = pneg %p342
      // Predicated region
      $region9: #{tpu_custom_call.1} parent=5 // pred_check
        _
      $region10: #{tpu_custom_call.1} parent=5 // pred_check_branch
        %345 = sbr.rel (%p342) target = $region12
      $region11: #{tpu_custom_call.1} parent=5 // pred_region
        %s346 = ssub.s32 %s28, 1
        // Predicated region
        $region13: #{tpu_custom_call.1} parent=11 // pred_check
          %p347 = pneg %p75
        $region14: #{tpu_custom_call.1} parent=11 // pred_check_branch
          %349 = sbr.rel (%p347) target = $region16
        $region15: #{tpu_custom_call.1} parent=11 // pred_region
          %s351 = ssub.s32 2048, 2048
          %352 = vsyncadd [#allocation6], %s351
          %s353 = sshll.u32 [#allocation5], 4
          %s354 = int_to_ptr.vmem [resolvable:$true] %s353
          %359 = dma.hbm_to_vmem [thread:$0]  %s1, 2048, %s354, [#allocation6], 128, 128, 8
        $region16: #{tpu_custom_call.1} parent=11 // pred_fallthru
          _
        // Predicated region
        $region17: #{tpu_custom_call.1} parent=11 // pred_check
          %p360 = pneg %p96
        $region18: #{tpu_custom_call.1} parent=11 // pred_check_branch
          %362 = sbr.rel (%p360) target = $region20
        $region19: #{tpu_custom_call.1} parent=11 // pred_region
          _
        $region20: #{tpu_custom_call.1} parent=11 // pred_fallthru
          _
        // Predicated region
        $region21: #{tpu_custom_call.1} parent=11 // pred_check
          %p363 = pneg %p117
        $region22: #{tpu_custom_call.1} parent=11 // pred_check_branch
          %365 = sbr.rel (%p363) target = $region24
        $region23: #{tpu_custom_call.1} parent=11 // pred_region
          %s367 = ssub.s32 2048, 2048
          %368 = vsyncadd [#allocation6], %s367
          %s369 = sshll.u32 [#allocation7], 4
          %s370 = int_to_ptr.vmem [resolvable:$true] %s369
          %375 = dma.hbm_to_vmem [thread:$0]  %s3, 2048, %s370, [#allocation6], 128, 128, 8
        $region24: #{tpu_custom_call.1} parent=11 // pred_fallthru
          _
        // Predicated region
        $region25: #{tpu_custom_call.1} parent=11 // pred_check
          %p376 = pneg %p138
        $region26: #{tpu_custom_call.1} parent=11 // pred_check_branch
          %378 = sbr.rel (%p376) target = $region28
        $region27: #{tpu_custom_call.1} parent=11 // pred_region
          _
        $region28: #{tpu_custom_call.1} parent=11 // pred_fallthru
          _
        // Predicated region
        $region29: #{tpu_custom_call.1} parent=11 // pred_check
          %p379 = pneg %p159
        $region30: #{tpu_custom_call.1} parent=11 // pred_check_branch
          %381 = sbr.rel (%p379) target = $region32
        $region31: #{tpu_custom_call.1} parent=11 // pred_region
          %s383 = ssub.s32 2048, 2048
          %384 = vsyncadd [#allocation9], %s383
          %s385 = sshll.u32 [#allocation8], 4
          %s386 = int_to_ptr.vmem [resolvable:$true] %s385
          %391 = dma.hbm_to_vmem [thread:$0]  %s5, 2048, %s386, [#allocation9], 128, 128, 8
        $region32: #{tpu_custom_call.1} parent=11 // pred_fallthru
          _
        // Predicated region
        $region33: #{tpu_custom_call.1} parent=11 // pred_check
          %p392 = pneg %p180
        $region34: #{tpu_custom_call.1} parent=11 // pred_check_branch
          %394 = sbr.rel (%p392) target = $region36
        $region35: #{tpu_custom_call.1} parent=11 // pred_region
          _
        $region36: #{tpu_custom_call.1} parent=11 // pred_fallthru
          _
        // Predicated region
        $region37: #{tpu_custom_call.1} parent=11 // pred_check
          %p395 = pneg %p201
        $region38: #{tpu_custom_call.1} parent=11 // pred_check_branch
          %397 = sbr.rel (%p395) target = $region40
        $region39: #{tpu_custom_call.1} parent=11 // pred_region
          _
        $region40: #{tpu_custom_call.1} parent=11 // pred_fallthru
          _
        // Predicated region
        $region41: #{tpu_custom_call.1} parent=11 // pred_check
          %p398 = pneg %p222
        $region42: #{tpu_custom_call.1} parent=11 // pred_check_branch
          %400 = sbr.rel (%p398) target = $region44
        $region43: #{tpu_custom_call.1} parent=11 // pred_region
          _
        $region44: #{tpu_custom_call.1} parent=11 // pred_fallthru
          _
        // Predicated region
        $region45: #{tpu_custom_call.1} parent=11 // pred_check
          %p401 = pneg %p243
        $region46: #{tpu_custom_call.1} parent=11 // pred_check_branch
          %403 = sbr.rel (%p401) target = $region48
        $region47: #{tpu_custom_call.1} parent=11 // pred_region
          %s405 = ssub.s32 2048, 2048
          %406 = vsyncadd [#allocation9], %s405
          %s407 = sshll.u32 [#allocation10], 4
          %s408 = int_to_ptr.vmem [resolvable:$true] %s407
          %413 = dma.hbm_to_vmem [thread:$0]  %s9, 2048, %s408, [#allocation9], 128, 128, 8
        $region48: #{tpu_custom_call.1} parent=11 // pred_fallthru
          _
        // Predicated region
        $region49: #{tpu_custom_call.1} parent=11 // pred_check
          %p414 = pneg %p264
        $region50: #{tpu_custom_call.1} parent=11 // pred_check_branch
          %416 = sbr.rel (%p414) target = $region52
        $region51: #{tpu_custom_call.1} parent=11 // pred_region
          _
        $region52: #{tpu_custom_call.1} parent=11 // pred_fallthru
          _
        // Predicated region
        $region53: #{tpu_custom_call.1} parent=11 // pred_check
          %p417 = pneg %p285
        $region54: #{tpu_custom_call.1} parent=11 // pred_check_branch
          %419 = sbr.rel (%p417) target = $region56
        $region55: #{tpu_custom_call.1} parent=11 // pred_region
          %s421 = ssub.s32 2048, 2048
          %422 = vsyncadd [#allocation12], %s421
          %s423 = sshll.u32 [#allocation11], 4
          %s424 = int_to_ptr.vmem [resolvable:$true] %s423
          %429 = dma.hbm_to_vmem [thread:$0]  %s11, 2048, %s424, [#allocation12], 128, 128, 8
        $region56: #{tpu_custom_call.1} parent=11 // pred_fallthru
          _
        // Predicated region
        $region57: #{tpu_custom_call.1} parent=11 // pred_check
          %p430 = pneg %p306
        $region58: #{tpu_custom_call.1} parent=11 // pred_check_branch
          %432 = sbr.rel (%p430) target = $region60
        $region59: #{tpu_custom_call.1} parent=11 // pred_region
          _
        $region60: #{tpu_custom_call.1} parent=11 // pred_fallthru
          _
      $region12: #{tpu_custom_call.1} parent=5 // pred_fallthru
        _
      %p433 = scmp.lt.s32.totalorder %s28, 2
      // Predicated region
      $region61: #{tpu_custom_call.1} parent=5 // pred_check
        %p434 = pneg %p433
      $region62: #{tpu_custom_call.1} parent=5 // pred_check_branch
        %436 = sbr.rel (%p434) target = $region64
      $region63: #{tpu_custom_call.1} parent=5 // pred_region
        // Predicated region
        $region65: #{tpu_custom_call.1} parent=63 // pred_check
          %p437 = pneg %p48
        $region66: #{tpu_custom_call.1} parent=63 // pred_check_branch
          %439 = sbr.rel (%p437) target = $region68
        $region67: #{tpu_custom_call.1} parent=63 // pred_region
          %s440 = sand.u32 %s38, 1
          %s441 = scalar_lea.sflag [#allocation3], %s440
          %s442 = sand.u32 %s38, 1
          %s443 = smul.addr %s442, 8
          %s444 = scalar_lea.vmem [#allocation2], %s443
          %s446 = ssub.s32 128, 128
          %447 = vsyncadd %s441, %s446
          %s448 = smul.addr %s28, 128
          %s449 = scalar_lea.hbm %s0, %s448
          %s451 = sshll.u32 %s444, 4
          %s452 = int_to_ptr.vmem [resolvable:$true] %s451
          %454 = dma.hbm_to_vmem [thread:$0]  %s449, 128, %s452, %s441
        $region68: #{tpu_custom_call.1} parent=63 // pred_fallthru
          _
      $region64: #{tpu_custom_call.1} parent=5 // pred_fallthru
        _
      %p455 = scmp.le.s32.totalorder 1, %s28
      %p456 = scmp.lt.s32.totalorder %s28, 3
      %p457 = pnand %p455, %p456
      %p458 = pneg %p457
      // Predicated region
      $region69: #{tpu_custom_call.1} parent=5 // pred_check
        _
      $region70: #{tpu_custom_call.1} parent=5 // pred_check_branch
        %460 = sbr.rel (%p457) target = $region72
      $region71: #{tpu_custom_call.1} parent=5 // pred_region
        %s461 = ssub.s32 %s28, 1
        %s462 = sand.u32 %s41, 1
        %s463 = scalar_lea.sflag [#allocation3], %s462
        %s464 = sand.u32 %s41, 1
        %s465 = smul.addr %s464, 8
        %s466 = scalar_lea.vmem [#allocation2], %s465
        // Predicated region
        $region73: #{tpu_custom_call.1} parent=71 // pred_check
          %p467 = pneg %p54
        $region74: #{tpu_custom_call.1} parent=71 // pred_check_branch
          %469 = sbr.rel (%p467) target = $region76
        $region75: #{tpu_custom_call.1} parent=71 // pred_region
          %470 = dma.done %s463, 128
        $region76: #{tpu_custom_call.1} parent=71 // pred_fallthru
          _
        // Predicated region
        $region77: #{tpu_custom_call.1} parent=71 // pred_check
          %p471 = pneg %p75
        $region78: #{tpu_custom_call.1} parent=71 // pred_check_branch
          %473 = sbr.rel (%p471) target = $region80
        $region79: #{tpu_custom_call.1} parent=71 // pred_region
          %474 = dma.done [#allocation6], 2048
        $region80: #{tpu_custom_call.1} parent=71 // pred_fallthru
          _
        // Predicated region
        $region81: #{tpu_custom_call.1} parent=71 // pred_check
          %p475 = pneg %p117
        $region82: #{tpu_custom_call.1} parent=71 // pred_check_branch
          %477 = sbr.rel (%p475) target = $region84
        $region83: #{tpu_custom_call.1} parent=71 // pred_region
          %478 = dma.done [#allocation6], 2048
        $region84: #{tpu_custom_call.1} parent=71 // pred_fallthru
          _
        // Predicated region
        $region85: #{tpu_custom_call.1} parent=71 // pred_check
          %p479 = pneg %p159
        $region86: #{tpu_custom_call.1} parent=71 // pred_check_branch
          %481 = sbr.rel (%p479) target = $region88
        $region87: #{tpu_custom_call.1} parent=71 // pred_region
          %482 = dma.done [#allocation9], 2048
        $region88: #{tpu_custom_call.1} parent=71 // pred_fallthru
          _
        // Predicated region
        $region89: #{tpu_custom_call.1} parent=71 // pred_check
          %p483 = pneg %p243
        $region90: #{tpu_custom_call.1} parent=71 // pred_check_branch
          %485 = sbr.rel (%p483) target = $region92
        $region91: #{tpu_custom_call.1} parent=71 // pred_region
          %486 = dma.done [#allocation9], 2048
        $region92: #{tpu_custom_call.1} parent=71 // pred_fallthru
          _
        // Predicated region
        $region93: #{tpu_custom_call.1} parent=71 // pred_check
          %p487 = pneg %p285
        $region94: #{tpu_custom_call.1} parent=71 // pred_check_branch
          %489 = sbr.rel (%p487) target = $region96
        $region95: #{tpu_custom_call.1} parent=71 // pred_region
          %490 = dma.done [#allocation12], 2048
        $region96: #{tpu_custom_call.1} parent=71 // pred_fallthru
          _
        %s491 = sand.u32 %s41, 1
        %s492 = scalar_lea.sflag [#allocation3], %s491
        %s493 = sand.u32 %s41, 1
        %s494 = smul.addr %s493, 8
        %s495 = scalar_lea.vmem [#allocation2], %s494
        %p496 = pneg %p54
        %p497 = pneg %p51
        %p498 = pneg %p75
        %p499 = pneg %p72
        %p500 = pneg %p96
        %p501 = pneg %p93
        %p502 = pneg %p117
        %p503 = pneg %p114
        %p504 = pneg %p138
        %p505 = pneg %p135
        %p506 = pneg %p159
        %p507 = pneg %p156
        %p508 = pneg %p180
        %p509 = pneg %p177
        %p510 = pneg %p201
        %p511 = pneg %p198
        %p512 = pneg %p222
        %p513 = pneg %p219
        %p514 = pneg %p243
        %p515 = pneg %p240
        %p516 = pneg %p264
        %p517 = pneg %p261
        %p518 = pneg %p285
        %p519 = pneg %p282
        %p520 = pneg %p306
        %p521 = pneg %p303
        %p522 = pneg %p332
        %p523 = pneg %p329
        %s524 = sand.u32 %s319, 1
        %s525 = scalar_lea.sflag [#allocation4], %s524
        %s526 = sand.u32 %s319, 1
        %s527 = smul.addr %s526, 8
        %s528 = scalar_lea.vmem [#allocation13], %s527
        %v529 = vld [vmem:[%s466] sm:$0xff]
        %v530 = vld [vmem:[#allocation5] sm:$0xff]
        %v531 = vld [vmem:[#allocation5 + $0x8] sm:$0xff]
        %v532 = vld [vmem:[#allocation5 + $0x10] sm:$0xff]
        %v533 = vld [vmem:[#allocation5 + $0x18] sm:$0xff]
        %v534 = vld [vmem:[#allocation5 + $0x20] sm:$0xff]
        %v535 = vld [vmem:[#allocation5 + $0x28] sm:$0xff]
        %v536 = vld [vmem:[#allocation5 + $0x30] sm:$0xff]
        %v537 = vld [vmem:[#allocation5 + $0x38] sm:$0xff]
        %v538 = vld [vmem:[#allocation5 + $0x40] sm:$0xff]
        %v539 = vld [vmem:[#allocation5 + $0x48] sm:$0xff]
        %v540 = vld [vmem:[#allocation5 + $0x50] sm:$0xff]
        %v541 = vld [vmem:[#allocation5 + $0x58] sm:$0xff]
        %v542 = vld [vmem:[#allocation5 + $0x60] sm:$0xff]
        %v543 = vld [vmem:[#allocation5 + $0x68] sm:$0xff]
        %v544 = vld [vmem:[#allocation5 + $0x70] sm:$0xff]
        %v545 = vld [vmem:[#allocation5 + $0x78] sm:$0xff]
        %v546 = vld [vmem:[%s2] sm:$0x1]
        %v548 = vlaneseq
        %v549 = vshrl.u32 %v548, 7
        %v550 = vsub.s32 0, %v549
        %v551 = vrot.slane %v546, %v550
        %553 = vmatprep.subr.mxu0 0.0
        %554 = vmatpush1.msra.mxu0 %v530
        %555 = vmatprep.subr.mxu0 0.0
        %556 = vmatpush1.msra.mxu0 %v531
        %557 = vmatprep.subr.mxu0 0.0
        %558 = vmatpush1.msra.mxu0 %v532
        %559 = vmatprep.subr.mxu0 0.0
        %560 = vmatpush1.msra.mxu0 %v533
        %561 = vmatprep.subr.mxu0 0.0
        %562 = vmatpush1.msra.mxu0 %v534
        %563 = vmatprep.subr.mxu0 0.0
        %564 = vmatpush1.msra.mxu0 %v535
        %565 = vmatprep.subr.mxu0 0.0
        %566 = vmatpush1.msra.mxu0 %v536
        %567 = vmatprep.subr.mxu0 0.0
        %568 = vmatpush1.msra.mxu0 %v537
        %569 = vmatprep.subr.mxu0 0.0
        %570 = vmatpush1.msra.mxu0 %v538
        %571 = vmatprep.subr.mxu0 0.0
        %572 = vmatpush1.msra.mxu0 %v539
        %573 = vmatprep.subr.mxu0 0.0
        %574 = vmatpush1.msra.mxu0 %v540
        %575 = vmatprep.subr.mxu0 0.0
        %576 = vmatpush1.msra.mxu0 %v541
        %577 = vmatprep.subr.mxu0 0.0
        %578 = vmatpush1.msra.mxu0 %v542
        %579 = vmatprep.subr.mxu0 0.0
        %580 = vmatpush1.msra.mxu0 %v543
        %581 = vmatprep.subr.mxu0 0.0
        %582 = vmatpush1.msra.mxu0 %v544
        %583 = vmatprep.subr.mxu0 0.0
        %584 = vmatpush1.msra.mxu0 %v545
        %585 = vmatprep.subr.mxu0 0.0
        %586 = vmatpush1.msra.mxu0 0.0
        %587 = vmatprep.subr.mxu0 0.0
        %588 = vmatpush1.msra.mxu0 0.0
        %589 = vmatprep.subr.mxu0 0.0
        %590 = vmatpush1.msra.mxu0 0.0
        %591 = vmatprep.subr.mxu0 0.0
        %592 = vmatpush1.msra.mxu0 0.0
        %593 = vmatprep.subr.mxu0 0.0
        %594 = vmatpush1.msra.mxu0 0.0
        %595 = vmatprep.subr.mxu0 0.0
        %596 = vmatpush1.msra.mxu0 0.0
        %597 = vmatprep.subr.mxu0 0.0
        %598 = vmatpush1.msra.mxu0 0.0
        %599 = vmatprep.subr.mxu0 0.0
        %600 = vmatpush1.msra.mxu0 0.0
        %601 = vmatprep.subr.mxu0 0.0
        %602 = vmatpush1.msra.mxu0 0.0
        %603 = vmatprep.subr.mxu0 0.0
        %604 = vmatpush1.msra.mxu0 0.0
        %605 = vmatprep.subr.mxu0 0.0
        %606 = vmatpush1.msra.mxu0 0.0
        %607 = vmatprep.subr.mxu0 0.0
        %608 = vmatpush1.msra.mxu0 0.0
        %609 = vmatprep.subr.mxu0 0.0
        %610 = vmatpush1.msra.mxu0 0.0
        %611 = vmatprep.subr.mxu0 0.0
        %612 = vmatpush1.msra.mxu0 0.0
        %613 = vmatprep.subr.mxu0 0.0
        %614 = vmatpush1.msra.mxu0 0.0
        %615 = vmatprep.subr.mxu0 0.0
        %616 = vmatpush1.msra.mxu0 0.0
        %617 = vmatprep.mubr.f32.mxu0 0.0
        %618 = vmatmul.mubr.f32.gmra.mrb[0].mxu0 %v529
        %v619 = vpop.f32.mrb[0].mxu0
        %v620 = vadd.f32 %v551, %v619
        %v621 = vpop.f32.mrb[0].mxu0
        %622 = vdwg.mxu0
        %v623 = vmul.f32 %v620, 0.01
        %v624 = vmax.f32 %v620, %v623
        %v625 = vld [vmem:[#allocation7] sm:$0xff]
        %v626 = vld [vmem:[#allocation7 + $0x8] sm:$0xff]
        %v627 = vld [vmem:[#allocation7 + $0x10] sm:$0xff]
        %v628 = vld [vmem:[#allocation7 + $0x18] sm:$0xff]
        %v629 = vld [vmem:[#allocation7 + $0x20] sm:$0xff]
        %v630 = vld [vmem:[#allocation7 + $0x28] sm:$0xff]
        %v631 = vld [vmem:[#allocation7 + $0x30] sm:$0xff]
        %v632 = vld [vmem:[#allocation7 + $0x38] sm:$0xff]
        %v633 = vld [vmem:[#allocation7 + $0x40] sm:$0xff]
        %v634 = vld [vmem:[#allocation7 + $0x48] sm:$0xff]
        %v635 = vld [vmem:[#allocation7 + $0x50] sm:$0xff]
        %v636 = vld [vmem:[#allocation7 + $0x58] sm:$0xff]
        %v637 = vld [vmem:[#allocation7 + $0x60] sm:$0xff]
        %v638 = vld [vmem:[#allocation7 + $0x68] sm:$0xff]
        %v639 = vld [vmem:[#allocation7 + $0x70] sm:$0xff]
        %v640 = vld [vmem:[#allocation7 + $0x78] sm:$0xff]
        %v641 = vld [vmem:[%s4] sm:$0x1]
        %v643 = vlaneseq
        %v644 = vshrl.u32 %v643, 7
        %v645 = vsub.s32 0, %v644
        %v646 = vrot.slane %v641, %v645
        %648 = vmatprep.subr.mxu0 0.0
        %649 = vmatpush1.msra.mxu0 %v625
        %650 = vmatprep.subr.mxu0 0.0
        %651 = vmatpush1.msra.mxu0 %v626
        %652 = vmatprep.subr.mxu0 0.0
        %653 = vmatpush1.msra.mxu0 %v627
        %654 = vmatprep.subr.mxu0 0.0
        %655 = vmatpush1.msra.mxu0 %v628
        %656 = vmatprep.subr.mxu0 0.0
        %657 = vmatpush1.msra.mxu0 %v629
        %658 = vmatprep.subr.mxu0 0.0
        %659 = vmatpush1.msra.mxu0 %v630
        %660 = vmatprep.subr.mxu0 0.0
        %661 = vmatpush1.msra.mxu0 %v631
        %662 = vmatprep.subr.mxu0 0.0
        %663 = vmatpush1.msra.mxu0 %v632
        %664 = vmatprep.subr.mxu0 0.0
        %665 = vmatpush1.msra.mxu0 %v633
        %666 = vmatprep.subr.mxu0 0.0
        %667 = vmatpush1.msra.mxu0 %v634
        %668 = vmatprep.subr.mxu0 0.0
        %669 = vmatpush1.msra.mxu0 %v635
        %670 = vmatprep.subr.mxu0 0.0
        %671 = vmatpush1.msra.mxu0 %v636
        %672 = vmatprep.subr.mxu0 0.0
        %673 = vmatpush1.msra.mxu0 %v637
        %674 = vmatprep.subr.mxu0 0.0
        %675 = vmatpush1.msra.mxu0 %v638
        %676 = vmatprep.subr.mxu0 0.0
        %677 = vmatpush1.msra.mxu0 %v639
        %678 = vmatprep.subr.mxu0 0.0
        %679 = vmatpush1.msra.mxu0 %v640
        %680 = vmatprep.subr.mxu0 0.0
        %681 = vmatpush1.msra.mxu0 0.0
        %682 = vmatprep.subr.mxu0 0.0
        %683 = vmatpush1.msra.mxu0 0.0
        %684 = vmatprep.subr.mxu0 0.0
        %685 = vmatpush1.msra.mxu0 0.0
        %686 = vmatprep.subr.mxu0 0.0
        %687 = vmatpush1.msra.mxu0 0.0
        %688 = vmatprep.subr.mxu0 0.0
        %689 = vmatpush1.msra.mxu0 0.0
        %690 = vmatprep.subr.mxu0 0.0
        %691 = vmatpush1.msra.mxu0 0.0
        %692 = vmatprep.subr.mxu0 0.0
        %693 = vmatpush1.msra.mxu0 0.0
        %694 = vmatprep.subr.mxu0 0.0
        %695 = vmatpush1.msra.mxu0 0.0
        %696 = vmatprep.subr.mxu0 0.0
        %697 = vmatpush1.msra.mxu0 0.0
        %698 = vmatprep.subr.mxu0 0.0
        %699 = vmatpush1.msra.mxu0 0.0
        %700 = vmatprep.subr.mxu0 0.0
        %701 = vmatpush1.msra.mxu0 0.0
        %702 = vmatprep.subr.mxu0 0.0
        %703 = vmatpush1.msra.mxu0 0.0
        %704 = vmatprep.subr.mxu0 0.0
        %705 = vmatpush1.msra.mxu0 0.0
        %706 = vmatprep.subr.mxu0 0.0
        %707 = vmatpush1.msra.mxu0 0.0
        %708 = vmatprep.subr.mxu0 0.0
        %709 = vmatpush1.msra.mxu0 0.0
        %710 = vmatprep.subr.mxu0 0.0
        %711 = vmatpush1.msra.mxu0 0.0
        %712 = vmatprep.mubr.f32.mxu0 0.0
        %713 = vmatmul.mubr.f32.gmra.mrb[0].mxu0 %v624
        %v714 = vpop.f32.mrb[0].mxu0
        %v715 = vadd.f32 %v646, %v714
        %v716 = vpop.f32.mrb[0].mxu0
        %717 = vdwg.mxu0
        %v718 = vmul.f32 %v715, 0.01
        %v719 = vmax.f32 %v715, %v718
        %v720 = vld [vmem:[#allocation8] sm:$0xff]
        %v721 = vld [vmem:[#allocation8 + $0x8] sm:$0xff]
        %v722 = vld [vmem:[#allocation8 + $0x10] sm:$0xff]
        %v723 = vld [vmem:[#allocation8 + $0x18] sm:$0xff]
        %v724 = vld [vmem:[#allocation8 + $0x20] sm:$0xff]
        %v725 = vld [vmem:[#allocation8 + $0x28] sm:$0xff]
        %v726 = vld [vmem:[#allocation8 + $0x30] sm:$0xff]
        %v727 = vld [vmem:[#allocation8 + $0x38] sm:$0xff]
        %v728 = vld [vmem:[#allocation8 + $0x40] sm:$0xff]
        %v729 = vld [vmem:[#allocation8 + $0x48] sm:$0xff]
        %v730 = vld [vmem:[#allocation8 + $0x50] sm:$0xff]
        %v731 = vld [vmem:[#allocation8 + $0x58] sm:$0xff]
        %v732 = vld [vmem:[#allocation8 + $0x60] sm:$0xff]
        %v733 = vld [vmem:[#allocation8 + $0x68] sm:$0xff]
        %v734 = vld [vmem:[#allocation8 + $0x70] sm:$0xff]
        %v735 = vld [vmem:[#allocation8 + $0x78] sm:$0xff]
        %v736 = vld [vmem:[%s6] sm:$0x1]
        %v738 = vlaneseq
        %v739 = vshrl.u32 %v738, 7
        %v740 = vsub.s32 0, %v739
        %v741 = vrot.slane %v736, %v740
        %743 = vmatprep.subr.mxu0 0.0
        %744 = vmatpush1.msra.mxu0 %v720
        %745 = vmatprep.subr.mxu0 0.0
        %746 = vmatpush1.msra.mxu0 %v721
        %747 = vmatprep.subr.mxu0 0.0
        %748 = vmatpush1.msra.mxu0 %v722
        %749 = vmatprep.subr.mxu0 0.0
        %750 = vmatpush1.msra.mxu0 %v723
        %751 = vmatprep.subr.mxu0 0.0
        %752 = vmatpush1.msra.mxu0 %v724
        %753 = vmatprep.subr.mxu0 0.0
        %754 = vmatpush1.msra.mxu0 %v725
        %755 = vmatprep.subr.mxu0 0.0
        %756 = vmatpush1.msra.mxu0 %v726
        %757 = vmatprep.subr.mxu0 0.0
        %758 = vmatpush1.msra.mxu0 %v727
        %759 = vmatprep.subr.mxu0 0.0
        %760 = vmatpush1.msra.mxu0 %v728
        %761 = vmatprep.subr.mxu0 0.0
        %762 = vmatpush1.msra.mxu0 %v729
        %763 = vmatprep.subr.mxu0 0.0
        %764 = vmatpush1.msra.mxu0 %v730
        %765 = vmatprep.subr.mxu0 0.0
        %766 = vmatpush1.msra.mxu0 %v731
        %767 = vmatprep.subr.mxu0 0.0
        %768 = vmatpush1.msra.mxu0 %v732
        %769 = vmatprep.subr.mxu0 0.0
        %770 = vmatpush1.msra.mxu0 %v733
        %771 = vmatprep.subr.mxu0 0.0
        %772 = vmatpush1.msra.mxu0 %v734
        %773 = vmatprep.subr.mxu0 0.0
        %774 = vmatpush1.msra.mxu0 %v735
        %775 = vmatprep.subr.mxu0 0.0
        %776 = vmatpush1.msra.mxu0 0.0
        %777 = vmatprep.subr.mxu0 0.0
        %778 = vmatpush1.msra.mxu0 0.0
        %779 = vmatprep.subr.mxu0 0.0
        %780 = vmatpush1.msra.mxu0 0.0
        %781 = vmatprep.subr.mxu0 0.0
        %782 = vmatpush1.msra.mxu0 0.0
        %783 = vmatprep.subr.mxu0 0.0
        %784 = vmatpush1.msra.mxu0 0.0
        %785 = vmatprep.subr.mxu0 0.0
        %786 = vmatpush1.msra.mxu0 0.0
        %787 = vmatprep.subr.mxu0 0.0
        %788 = vmatpush1.msra.mxu0 0.0
        %789 = vmatprep.subr.mxu0 0.0
        %790 = vmatpush1.msra.mxu0 0.0
        %791 = vmatprep.subr.mxu0 0.0
        %792 = vmatpush1.msra.mxu0 0.0
        %793 = vmatprep.subr.mxu0 0.0
        %794 = vmatpush1.msra.mxu0 0.0
        %795 = vmatprep.subr.mxu0 0.0
        %796 = vmatpush1.msra.mxu0 0.0
        %797 = vmatprep.subr.mxu0 0.0
        %798 = vmatpush1.msra.mxu0 0.0
        %799 = vmatprep.subr.mxu0 0.0
        %800 = vmatpush1.msra.mxu0 0.0
        %801 = vmatprep.subr.mxu0 0.0
        %802 = vmatpush1.msra.mxu0 0.0
        %803 = vmatprep.subr.mxu0 0.0
        %804 = vmatpush1.msra.mxu0 0.0
        %805 = vmatprep.subr.mxu0 0.0
        %806 = vmatpush1.msra.mxu0 0.0
        %807 = vmatprep.mubr.f32.mxu0 0.0
        %808 = vmatmul.mubr.f32.gmra.mrb[0].mxu0 %v719
        %v809 = vpop.f32.mrb[0].mxu0
        %v810 = vadd.f32 %v741, %v809
        %v811 = vpop.f32.mrb[0].mxu0
        %812 = vdwg.mxu0
        %813 = vadd.xlane.f32.xlu0 %v810
        %v814 = vpop.xlane.xlu0 %813
        %v815 = vmul.f32 %v814, 0.125
        %v816 = vlaneseq
        %v817 = vand.u32 %v816, 127
        %vm818 = vcmp.lt.s32.totalorder %v817, 8
        %v819 = vsub.f32 %v810, %v815
        %v820 = vsel %vm818, 1, 0
        %vm821 = vcmp.eq.s32.totalorder %v820, 1
        %v822 = vsel %vm821, %v819, 0.0
        %v823 = vmul.f32 %v822, %v822
        %824 = vadd.xlane.f32.xlu0 %v823
        %v825 = vpop.xlane.xlu0 %824
        %v826 = vmul.f32 %v825, 0.125
        %v827 = vadd.f32 %v826, 1e-05
        %v828 = vrsqrt.pop %v827
        %v829 = vmul.f32 %v822, %v828
        %v830 = vld [vmem:[%s7] sm:$0x1]
        %v832 = vlaneseq
        %v833 = vshrl.u32 %v832, 7
        %v834 = vsub.s32 0, %v833
        %v835 = vrot.slane %v830, %v834
        %v837 = vmul.f32 %v829, %v835
        %v838 = vld [vmem:[%s8] sm:$0x1]
        %v840 = vlaneseq
        %v841 = vshrl.u32 %v840, 7
        %v842 = vsub.s32 0, %v841
        %v843 = vrot.slane %v838, %v842
        %v845 = vadd.f32 %v837, %v843
        %v846 = vadd.f32 %v845, %v529
        %v847 = vld [vmem:[#allocation10] sm:$0xff]
        %v848 = vld [vmem:[#allocation10 + $0x8] sm:$0xff]
        %v849 = vld [vmem:[#allocation10 + $0x10] sm:$0xff]
        %v850 = vld [vmem:[#allocation10 + $0x18] sm:$0xff]
        %v851 = vld [vmem:[#allocation10 + $0x20] sm:$0xff]
        %v852 = vld [vmem:[#allocation10 + $0x28] sm:$0xff]
        %v853 = vld [vmem:[#allocation10 + $0x30] sm:$0xff]
        %v854 = vld [vmem:[#allocation10 + $0x38] sm:$0xff]
        %v855 = vld [vmem:[#allocation10 + $0x40] sm:$0xff]
        %v856 = vld [vmem:[#allocation10 + $0x48] sm:$0xff]
        %v857 = vld [vmem:[#allocation10 + $0x50] sm:$0xff]
        %v858 = vld [vmem:[#allocation10 + $0x58] sm:$0xff]
        %v859 = vld [vmem:[#allocation10 + $0x60] sm:$0xff]
        %v860 = vld [vmem:[#allocation10 + $0x68] sm:$0xff]
        %v861 = vld [vmem:[#allocation10 + $0x70] sm:$0xff]
        %v862 = vld [vmem:[#allocation10 + $0x78] sm:$0xff]
        %v863 = vld [vmem:[%s10] sm:$0x1]
        %v865 = vlaneseq
        %v866 = vshrl.u32 %v865, 7
        %v867 = vsub.s32 0, %v866
        %v868 = vrot.slane %v863, %v867
        %870 = vmatprep.subr.mxu0 0.0
        %871 = vmatpush1.msra.mxu0 %v847
        %872 = vmatprep.subr.mxu0 0.0
        %873 = vmatpush1.msra.mxu0 %v848
        %874 = vmatprep.subr.mxu0 0.0
        %875 = vmatpush1.msra.mxu0 %v849
        %876 = vmatprep.subr.mxu0 0.0
        %877 = vmatpush1.msra.mxu0 %v850
        %878 = vmatprep.subr.mxu0 0.0
        %879 = vmatpush1.msra.mxu0 %v851
        %880 = vmatprep.subr.mxu0 0.0
        %881 = vmatpush1.msra.mxu0 %v852
        %882 = vmatprep.subr.mxu0 0.0
        %883 = vmatpush1.msra.mxu0 %v853
        %884 = vmatprep.subr.mxu0 0.0
        %885 = vmatpush1.msra.mxu0 %v854
        %886 = vmatprep.subr.mxu0 0.0
        %887 = vmatpush1.msra.mxu0 %v855
        %888 = vmatprep.subr.mxu0 0.0
        %889 = vmatpush1.msra.mxu0 %v856
        %890 = vmatprep.subr.mxu0 0.0
        %891 = vmatpush1.msra.mxu0 %v857
        %892 = vmatprep.subr.mxu0 0.0
        %893 = vmatpush1.msra.mxu0 %v858
        %894 = vmatprep.subr.mxu0 0.0
        %895 = vmatpush1.msra.mxu0 %v859
        %896 = vmatprep.subr.mxu0 0.0
        %897 = vmatpush1.msra.mxu0 %v860
        %898 = vmatprep.subr.mxu0 0.0
        %899 = vmatpush1.msra.mxu0 %v861
        %900 = vmatprep.subr.mxu0 0.0
        %901 = vmatpush1.msra.mxu0 %v862
        %902 = vmatprep.subr.mxu0 0.0
        %903 = vmatpush1.msra.mxu0 0.0
        %904 = vmatprep.subr.mxu0 0.0
        %905 = vmatpush1.msra.mxu0 0.0
        %906 = vmatprep.subr.mxu0 0.0
        %907 = vmatpush1.msra.mxu0 0.0
        %908 = vmatprep.subr.mxu0 0.0
        %909 = vmatpush1.msra.mxu0 0.0
        %910 = vmatprep.subr.mxu0 0.0
        %911 = vmatpush1.msra.mxu0 0.0
        %912 = vmatprep.subr.mxu0 0.0
        %913 = vmatpush1.msra.mxu0 0.0
        %914 = vmatprep.subr.mxu0 0.0
        %915 = vmatpush1.msra.mxu0 0.0
        %916 = vmatprep.subr.mxu0 0.0
        %917 = vmatpush1.msra.mxu0 0.0
        %918 = vmatprep.subr.mxu0 0.0
        %919 = vmatpush1.msra.mxu0 0.0
        %920 = vmatprep.subr.mxu0 0.0
        %921 = vmatpush1.msra.mxu0 0.0
        %922 = vmatprep.subr.mxu0 0.0
        %923 = vmatpush1.msra.mxu0 0.0
        %924 = vmatprep.subr.mxu0 0.0
        %925 = vmatpush1.msra.mxu0 0.0
        %926 = vmatprep.subr.mxu0 0.0
        %927 = vmatpush1.msra.mxu0 0.0
        %928 = vmatprep.subr.mxu0 0.0
        %929 = vmatpush1.msra.mxu0 0.0
        %930 = vmatprep.subr.mxu0 0.0
        %931 = vmatpush1.msra.mxu0 0.0
        %932 = vmatprep.subr.mxu0 0.0
        %933 = vmatpush1.msra.mxu0 0.0
        %934 = vmatprep.mubr.f32.mxu0 0.0
        %935 = vmatmul.mubr.f32.gmra.mrb[0].mxu0 %v846
        %v936 = vpop.f32.mrb[0].mxu0
        %v937 = vadd.f32 %v868, %v936
        %v938 = vpop.f32.mrb[0].mxu0
        %939 = vdwg.mxu0
        %v940 = vmul.f32 %v937, 0.01
        %v941 = vmax.f32 %v937, %v940
        %v942 = vld [vmem:[#allocation11] sm:$0xff]
        %v943 = vld [vmem:[#allocation11 + $0x8] sm:$0xff]
        %v944 = vld [vmem:[#allocation11 + $0x10] sm:$0xff]
        %v945 = vld [vmem:[#allocation11 + $0x18] sm:$0xff]
        %v946 = vld [vmem:[#allocation11 + $0x20] sm:$0xff]
        %v947 = vld [vmem:[#allocation11 + $0x28] sm:$0xff]
        %v948 = vld [vmem:[#allocation11 + $0x30] sm:$0xff]
        %v949 = vld [vmem:[#allocation11 + $0x38] sm:$0xff]
        %v950 = vld [vmem:[#allocation11 + $0x40] sm:$0xff]
        %v951 = vld [vmem:[#allocation11 + $0x48] sm:$0xff]
        %v952 = vld [vmem:[#allocation11 + $0x50] sm:$0xff]
        %v953 = vld [vmem:[#allocation11 + $0x58] sm:$0xff]
        %v954 = vld [vmem:[#allocation11 + $0x60] sm:$0xff]
        %v955 = vld [vmem:[#allocation11 + $0x68] sm:$0xff]
        %v956 = vld [vmem:[#allocation11 + $0x70] sm:$0xff]
        %v957 = vld [vmem:[#allocation11 + $0x78] sm:$0xff]
        %v958 = vld [vmem:[%s12] sm:$0x1]
        %v960 = vlaneseq
        %v961 = vshrl.u32 %v960, 7
        %v962 = vsub.s32 0, %v961
        %v963 = vrot.slane %v958, %v962
        %965 = vmatprep.subr.mxu0 0.0
        %966 = vmatpush1.msra.mxu0 %v942
        %967 = vmatprep.subr.mxu0 0.0
        %968 = vmatpush1.msra.mxu0 %v943
        %969 = vmatprep.subr.mxu0 0.0
        %970 = vmatpush1.msra.mxu0 %v944
        %971 = vmatprep.subr.mxu0 0.0
        %972 = vmatpush1.msra.mxu0 %v945
        %973 = vmatprep.subr.mxu0 0.0
        %974 = vmatpush1.msra.mxu0 %v946
        %975 = vmatprep.subr.mxu0 0.0
        %976 = vmatpush1.msra.mxu0 %v947
        %977 = vmatprep.subr.mxu0 0.0
        %978 = vmatpush1.msra.mxu0 %v948
        %979 = vmatprep.subr.mxu0 0.0
        %980 = vmatpush1.msra.mxu0 %v949
        %981 = vmatprep.subr.mxu0 0.0
        %982 = vmatpush1.msra.mxu0 %v950
        %983 = vmatprep.subr.mxu0 0.0
        %984 = vmatpush1.msra.mxu0 %v951
        %985 = vmatprep.subr.mxu0 0.0
        %986 = vmatpush1.msra.mxu0 %v952
        %987 = vmatprep.subr.mxu0 0.0
        %988 = vmatpush1.msra.mxu0 %v953
        %989 = vmatprep.subr.mxu0 0.0
        %990 = vmatpush1.msra.mxu0 %v954
        %991 = vmatprep.subr.mxu0 0.0
        %992 = vmatpush1.msra.mxu0 %v955
        %993 = vmatprep.subr.mxu0 0.0
        %994 = vmatpush1.msra.mxu0 %v956
        %995 = vmatprep.subr.mxu0 0.0
        %996 = vmatpush1.msra.mxu0 %v957
        %997 = vmatprep.subr.mxu0 0.0
        %998 = vmatpush1.msra.mxu0 0.0
        %999 = vmatprep.subr.mxu0 0.0
        %1000 = vmatpush1.msra.mxu0 0.0
        %1001 = vmatprep.subr.mxu0 0.0
        %1002 = vmatpush1.msra.mxu0 0.0
        %1003 = vmatprep.subr.mxu0 0.0
        %1004 = vmatpush1.msra.mxu0 0.0
        %1005 = vmatprep.subr.mxu0 0.0
        %1006 = vmatpush1.msra.mxu0 0.0
        %1007 = vmatprep.subr.mxu0 0.0
        %1008 = vmatpush1.msra.mxu0 0.0
        %1009 = vmatprep.subr.mxu0 0.0
        %1010 = vmatpush1.msra.mxu0 0.0
        %1011 = vmatprep.subr.mxu0 0.0
        %1012 = vmatpush1.msra.mxu0 0.0
        %1013 = vmatprep.subr.mxu0 0.0
        %1014 = vmatpush1.msra.mxu0 0.0
        %1015 = vmatprep.subr.mxu0 0.0
        %1016 = vmatpush1.msra.mxu0 0.0
        %1017 = vmatprep.subr.mxu0 0.0
        %1018 = vmatpush1.msra.mxu0 0.0
        %1019 = vmatprep.subr.mxu0 0.0
        %1020 = vmatpush1.msra.mxu0 0.0
        %1021 = vmatprep.subr.mxu0 0.0
        %1022 = vmatpush1.msra.mxu0 0.0
        %1023 = vmatprep.subr.mxu0 0.0
        %1024 = vmatpush1.msra.mxu0 0.0
        %1025 = vmatprep.subr.mxu0 0.0
        %1026 = vmatpush1.msra.mxu0 0.0
        %1027 = vmatprep.subr.mxu0 0.0
        %1028 = vmatpush1.msra.mxu0 0.0
        %1029 = vmatprep.mubr.f32.mxu0 0.0
        %1030 = vmatmul.mubr.f32.gmra.mrb[0].mxu0 %v941
        %v1031 = vpop.f32.mrb[0].mxu0
        %v1032 = vadd.f32 %v963, %v1031
        %v1033 = vpop.f32.mrb[0].mxu0
        %1034 = vdwg.mxu0
        %1035 = vst [vmem:[%s528] sm:$0xff] %v1032
        %s1036 = sand.u32 %s319, 1
        %s1037 = scalar_lea.sflag [#allocation4], %s1036
        %s1038 = sand.u32 %s319, 1
        %s1039 = smul.addr %s1038, 8
        %s1040 = scalar_lea.vmem [#allocation13], %s1039
        // Predicated region
        $region97: #{tpu_custom_call.1} parent=71 // pred_check
          %p1041 = pneg %p329
        $region98: #{tpu_custom_call.1} parent=71 // pred_check_branch
          %1043 = sbr.rel (%p1041) target = $region100
        $region99: #{tpu_custom_call.1} parent=71 // pred_region
          %s1045 = ssub.s32 128, 128
          %1046 = vsyncadd %s1037, %s1045
          %s1047 = smul.addr %s33, 128
          %s1048 = scalar_lea.hbm %s13, %s1047
          %s1050 = sshll.u32 %s1040, 4
          %s1051 = int_to_ptr.vmem [resolvable:$true] %s1050
          %1053 = dma.vmem_to_hbm [thread:$0]  %s1051, 128, %s1048, %s1037
        $region100: #{tpu_custom_call.1} parent=71 // pred_fallthru
          _
      $region72: #{tpu_custom_call.1} parent=5 // pred_fallthru
        _
      %p1054 = scmp.le.s32.totalorder 2, %s28
      // Predicated region
      $region101: #{tpu_custom_call.1} parent=5 // pred_check
        %p1055 = pneg %p1054
      $region102: #{tpu_custom_call.1} parent=5 // pred_check_branch
        %1057 = sbr.rel (%p1055) target = $region104
      $region103: #{tpu_custom_call.1} parent=5 // pred_region
        %s1058 = ssub.s32 %s28, 2
        // Predicated region
        $region105: #{tpu_custom_call.1} parent=103 // pred_check
          %p1059 = pneg %p335
        $region106: #{tpu_custom_call.1} parent=103 // pred_check_branch
          %1061 = sbr.rel (%p1059) target = $region108
        $region107: #{tpu_custom_call.1} parent=103 // pred_region
          %s1062 = sand.u32 %s320, 1
          %s1063 = scalar_lea.sflag [#allocation4], %s1062
          %s1064 = sand.u32 %s320, 1
          %s1065 = smul.addr %s1064, 8
          %s1066 = scalar_lea.vmem [#allocation13], %s1065
          %1067 = dma.done %s1063, 128
        $region108: #{tpu_custom_call.1} parent=103 // pred_fallthru
          _
      $region104: #{tpu_custom_call.1} parent=5 // pred_fallthru
        _
    $region6: #{tpu_custom_call.1} parent=1 // loop_footer
      %s32 = sadd.s32 1, %s28
    $region7: #{tpu_custom_call.1} parent=1 // loop_footer_branch
      %27 = sbr.rel target = $region3
    $region8: #{tpu_custom_call.1} parent=1 // loop_exit
      _
    %1068 = vsyncpa [#allocation3], 1
    %s1069 = scalar_lea.sflag [#allocation3], 1
    %1070 = vsyncpa %s1069, 1
    %1071 = vsyncpa [#allocation6], 1
    %1072 = vsyncpa [#allocation9], 1
    %1073 = vsyncpa [#allocation12], 1
    %1074 = vsyncpa [#allocation4], 1
    %s1075 = scalar_lea.sflag [#allocation4], 1
    %1076 = vsyncpa %s1075, 1

</llo_original>
